<compile_context>
chip_gen: v5e
topology: v5e:2x2
jax: 0.10.0
libtpu: 0.0.40
codegen_flags: <defaults>
</compile_context>

<pallas_src>
import jax
import jax.numpy as jnp
from jax.experimental import pallas as pl
from jax.experimental.pallas import tpu as pltpu


# ----------------------------------------------------------------------------- helpers

def _round_up(x, m):
    return ((x + m - 1) // m) * m


def _sublane_pad(C, itemsize):
    """VMEM tiles the second-to-last dim in units of 8 (f32) / 16 (bf16) / 32 (i8)."""
    return _round_up(C, 8 * max(1, 4 // itemsize))


def _choose_ts(C, S, itemsize):
    """Lane-dense spatial tile: multiple of 128, ~<= 2 MiB per (1, C, TS) block,
    <= 4096 lanes, and never larger than the lane-aligned part of S (S >= 128 here)."""
    c_pad = _sublane_pad(C, itemsize)
    budget_lanes = max(128, (2 << 20) // max(1, c_pad * itemsize))
    ts = max(128, min(4096, (budget_lanes // 128) * 128))
    ts = min(ts, (S // 128) * 128)
    return ts


def _compiler_params(dimension_semantics, block_bytes=(), temp_bytes=()):
    """Explicit VMEM budget: double-buffered blocks + single-buffered temps + headroom."""
    need = (2 * sum(int(b) for b in block_bytes)
            + sum(int(b) for b in temp_bytes) + (1 << 20))
    limit = int(min(max(need * 5 // 4, 16 * 1024 * 1024), 56 * 1024 * 1024))
    return pltpu.CompilerParams(
        dimension_semantics=dimension_semantics,
        vmem_limit_bytes=limit,
    )


# ----------------------------------------------------------------------------- kernels

def _se_gating_fused_kernel(x_ref, w_ref, b_ref, o_ref):
    # x_ref: (1, C, S), w_ref: (C, C) f32, b_ref: (C, 1) f32, o_ref: (1, C, S)
    x = x_ref[0].astype(jnp.float32)                               # (C, S)
    s = x.shape[-1]
    pooled = jnp.sum(x, axis=-1, keepdims=True) * (1.0 / s)        # (C, 1)
    logits = jnp.dot(w_ref[...], pooled,
                     preferred_element_type=jnp.float32) + b_ref[...]
    mask = jax.nn.sigmoid(logits)                                  # (C, 1)
    o_ref[0] = (x * mask).astype(o_ref.dtype)


def _make_pool_sum_kernel(ts, s_valid, needs_mask):
    """Stage 1: accumulate per-sample lane partial sums into a resident (C, 128) f32 block."""

    def kernel(x_ref, psum_ref):
        # x_ref: (1, C, ts) input dtype; psum_ref: (1, C, 128) f32 (resident across chunks).
        s_idx = pl.program_id(1)

        @pl.when(s_idx == 0)
        def _init():
            psum_ref[...] = jnp.zeros_like(psum_ref)

        x = x_ref[0].astype(jnp.float32)                           # (C, ts), f32 accumulate
        if needs_mask:
            # Ragged last chunk: out-of-bounds lanes hold stale buffer data -> zero them.
            lane = jax.lax.broadcasted_iota(jnp.int32, x.shape, 1)
            x = jnp.where(s_idx * ts + lane < s_valid, x, 0.0)
        acc = psum_ref[0]                                          # (C, 128)
        # Lane-aligned 128-wide slices -> pure VPU adds; the single cross-lane reduce
        # per sample happens in XLA afterwards.
        for j in range(ts // 128):
            acc = acc + x[:, j * 128:(j + 1) * 128]
        psum_ref[0] = acc

    return kernel


def _gate_mul_kernel(x_ref, gate_ref, o_ref):
    # x_ref: (1, C, ts); gate_ref: (1, C, 1) f32; o_ref: (1, C, ts)
    o_ref[0] = (x_ref[0].astype(jnp.float32) * gate_ref[0]).astype(o_ref.dtype)


# ----------------------------------------------------------------------------- wrappers

def _se_gating_fused(x_flat, w32, b32):
    N, C, S = x_flat.shape
    itemsize = jnp.dtype(x_flat.dtype).itemsize
    c_pad_in = _sublane_pad(C, itemsize)
    c_pad_f32 = _sublane_pad(C, 4)
    slab = c_pad_in * S * itemsize
    slab_f32 = c_pad_f32 * S * 4
    return pl.pallas_call(
        _se_gating_fused_kernel,
        out_shape=jax.ShapeDtypeStruct((N, C, S), x_flat.dtype),
        grid_spec=pltpu.PrefetchScalarGridSpec(
            num_scalar_prefetch=0,
            grid=(N,),
            in_specs=[
                pl.BlockSpec((1, C, S), lambda n: (n, 0, 0)),
                pl.BlockSpec((C, C), lambda n: (0, 0)),
                pl.BlockSpec((C, 1), lambda n: (0, 0)),
            ],
            out_specs=pl.BlockSpec((1, C, S), lambda n: (n, 0, 0)),
        ),
        compiler_params=_compiler_params(
            ("parallel",),
            block_bytes=(2 * slab, c_pad_f32 * C * 4, c_pad_f32 * 4),
            temp_bytes=(2 * slab_f32,),
        ),
    )(x_flat, w32, b32.reshape(C, 1))


def _se_gating_tiled(x_flat, w32, b32):
    N, C, S = x_flat.shape
    itemsize = jnp.dtype(x_flat.dtype).itemsize

    # Degenerate tiny-spatial case (S < one lane tile; only reachable with huge C):
    # pad lanes to 128 once. All realistic shapes take the no-copy path below.
    if S < 128:
        x_work = jnp.pad(x_flat, ((0, 0), (0, 0), (0, 128 - S)))
        s_work = 128
    else:
        x_work = x_flat
        s_work = S

    ts = _choose_ts(C, s_work, itemsize)
    n_chunks = pl.cdiv(s_work, ts)
    needs_mask = (s_work % ts) != 0

    c_pad_in = _sublane_pad(C, itemsize)
    c_pad_f32 = _sublane_pad(C, 4)
    x_block = c_pad_in * ts * itemsize
    x_block_f32 = c_pad_f32 * ts * 4
    psum_block = c_pad_f32 * 128 * 4

    # ---- Stage 1: per-sample partial lane-sums (f32), S tiled (reduction axis last) ----
    psum = pl.pallas_call(
        _make_pool_sum_kernel(ts, S, needs_mask),
        out_shape=jax.ShapeDtypeStruct((N, C, 128), jnp.float32),
        grid_spec=pltpu.PrefetchScalarGridSpec(
            num_scalar_prefetch=0,
            grid=(N, n_chunks),
            in_specs=[pl.BlockSpec((1, C, ts), lambda n, s: (n, 0, s))],
            out_specs=pl.BlockSpec((1, C, 128), lambda n, s: (n, 0, 0)),
        ),
        compiler_params=_compiler_params(
            ("parallel", "arbitrary"),
            block_bytes=(x_block, psum_block),
            temp_bytes=(x_block_f32,),
        ),
    )(x_work)

    # ---- Gate: batched channel matmul + sigmoid for all N samples at once (tiny; XLA) ----
    pooled = jnp.sum(psum, axis=-1) * (1.0 / S)                    # (N, C); zeros/mask safe
    logits = pooled @ w32.T + b32                                  # (N, C)
    gate = jax.nn.sigmoid(logits).astype(jnp.float32).reshape(N, C, 1)

    # ---- Stage 2: S-tiled, lane-dense broadcast multiply (both grid axes parallel).
    # Ragged last-chunk writes are masked by the block mapping -> no pad / slice copies.
    out = pl.pallas_call(
        _gate_mul_kernel,
        out_shape=jax.ShapeDtypeStruct((N, C, s_work), x_flat.dtype),
        grid_spec=pltpu.PrefetchScalarGridSpec(
            num_scalar_prefetch=0,
            grid=(N, n_chunks),
            in_specs=[
                pl.BlockSpec((1, C, ts), lambda n, s: (n, 0, s)),
                pl.BlockSpec((1, C, 1), lambda n, s: (n, 0, 0)),
            ],
            out_specs=pl.BlockSpec((1, C, ts), lambda n, s: (n, 0, s)),
        ),
        compiler_params=_compiler_params(
            ("parallel", "parallel"),
            block_bytes=(2 * x_block, c_pad_f32 * 4),
            temp_bytes=(2 * x_block_f32,),
        ),
    )(x_work, gate)

    if s_work != S:
        out = out[:, :, :S]
    return out


def se_gating(x, w, b, *, force_tiled=False):
    """x: (N, C, T, H, W) f32 or bf16; w: (C, C); b: (C,). Returns same shape/dtype as x."""
    N, C, T, H, W = x.shape
    S = T * H * W
    x_flat = x.reshape(N, C, S)
    w32 = w.astype(jnp.float32)
    b32 = b.astype(jnp.float32)

    # Fused single-pass only when the per-sample f32 footprint is small enough that
    # double-buffered in/out blocks + f32 temps stay well under every generation's
    # VMEM (incl. v7x's 64 MiB).
    slab_f32_bytes = _sublane_pad(C, 4) * S * 4
    if (not force_tiled) and slab_f32_bytes <= (4 << 20):
        out_flat = _se_gating_fused(x_flat, w32, b32)
    else:
        out_flat = _se_gating_tiled(x_flat, w32, b32)
    return out_flat.reshape(N, C, T, H, W)


# ----------------------------------------------------------------------------- reference

def _reference(x, w, b):
    # Pure-JAX reference mirroring the PyTorch module (f32).
    xf = x.astype(jnp.float32)
    pooled = jnp.mean(xf, axis=(2, 3, 4), keepdims=True)           # (N, C, 1, 1, 1)
    pc = pooled[:, :, 0, 0, 0]                                     # (N, C)
    logits = pc @ w.astype(jnp.float32).T + b.astype(jnp.float32)  # (N, C)
    mask = jax.nn.sigmoid(logits)[:, :, None, None, None]
    return xf * mask


if __name__ == "__main__":
    key = jax.random.PRNGKey(0)
    kx, kw, kb, kx2, kx3 = jax.random.split(key, 5)

    # Case 1: small f32 shape -> fused single-pass path.
    N, C, T, H, W = 2, 4, 4, 8, 8
    x = jax.random.normal(kx, (N, C, T, H, W), dtype=jnp.float32)
    w = jax.random.normal(kw, (C, C), dtype=jnp.float32) * 0.1
    b = jax.random.normal(kb, (C,), dtype=jnp.float32) * 0.1
    out = jax.block_until_ready(se_gating(x, w, b))
    ref = _reference(x, w, b)
    assert jnp.allclose(out, ref, atol=1e-5, rtol=1e-5), "fused path mismatch"

    # Case 2: f32, tiled two-stage path with S not a multiple of the tile
    # (exercises the ragged-chunk masking, no pad/slice HBM copies).
    N2, C2, T2, H2, W2 = 2, 8, 3, 10, 10
    x2 = jax.random.normal(kx2, (N2, C2, T2, H2, W2), dtype=jnp.float32)
    w2 = jax.random.normal(kw, (C2, C2), dtype=jnp.float32) * 0.1
    b2 = jax.random.normal(kb, (C2,), dtype=jnp.float32) * 0.1
    out2 = jax.block_until_ready(se_gating(x2, w2, b2, force_tiled=True))
    ref2 = _reference(x2, w2, b2)
    assert jnp.allclose(out2, ref2, atol=1e-5, rtol=1e-5), "tiled path mismatch"

    # Case 3: bf16 input, tiled path (f32 accumulation inside kernels, bf16 store).
    N3, C3, T3, H3, W3 = 1, 16, 4, 8, 16
    x3 = jax.random.normal(kx3, (N3, C3, T3, H3, W3), dtype=jnp.float32)
    w3 = jax.random.normal(kw, (C3, C3), dtype=jnp.float32) * 0.1
    b3 = jax.random.normal(kb, (C3,), dtype=jnp.float32) * 0.1
    x3_bf16 = x3.astype(jnp.bfloat16)
    out3 = jax.block_until_ready(se_gating(x3_bf16, w3, b3, force_tiled=True))
    ref3 = _reference(x3_bf16.astype(jnp.float32), w3, b3)
    assert jnp.allclose(out3.astype(jnp.float32), ref3, atol=5e-2, rtol=5e-2), \
        "bf16 tiled path mismatch"

    print("KERNEL_OK")
</pallas_src>

<mosaic_0001>
module attributes {stable_mosaic.version = 11 : i64} {
  func.func @_se_gating_fused_kernel(%arg0: i32, %arg1: memref<1x4x256xf32, #tpu.memory_space<vmem>>, %arg2: memref<4x4xf32, #tpu.memory_space<vmem>>, %arg3: memref<4x1xf32, #tpu.memory_space<vmem>>, %arg4: memref<1x4x256xf32, #tpu.memory_space<vmem>>) attributes {dimension_semantics = [#tpu.dimension_semantics<parallel>], iteration_bounds = array<i64: 2>, scalar_prefetch = 0 : i64, scratch_operands = 0 : i64, tpu.core_type = #tpu.core_type<tc>, window_params = [{transform_indices = @transform_0, window_bounds = array<i64: 1, 4, 256>}, {pipeline_mode = #tpu.pipeline_mode<synchronous>, transform_indices = @transform_1, window_bounds = array<i64: 4, 4>}, {pipeline_mode = #tpu.pipeline_mode<synchronous>, transform_indices = @transform_2, window_bounds = array<i64: 4, 1>}, {transform_indices = @transform_3, window_bounds = array<i64: 1, 4, 256>}]} {
    %c0 = arith.constant 0 : index
    %c0_0 = arith.constant 0 : index
    %c0_1 = arith.constant 0 : index
    %0 = vector.load %arg1[%c0, %c0_0, %c0_1] : memref<1x4x256xf32, #tpu.memory_space<vmem>>, vector<1x4x256xf32>
    %1 = vector.shape_cast %0 : vector<1x4x256xf32> to vector<4x256xf32>
    %cst = arith.constant dense<0.000000e+00> : vector<4xf32>
    %2 = vector.multi_reduction <add>, %1, %cst [1] : vector<4x256xf32> to vector<4xf32>
    %3 = vector.shape_cast %2 : vector<4xf32> to vector<4x1xf32>
    %cst_2 = arith.constant 3.906250e-03 : f32
    %4 = vector.broadcast %cst_2 : f32 to vector<4x1xf32>
    %5 = arith.mulf %3, %4 : vector<4x1xf32>
    %c0_3 = arith.constant 0 : index
    %c0_4 = arith.constant 0 : index
    %6 = vector.load %arg2[%c0_3, %c0_4] : memref<4x4xf32, #tpu.memory_space<vmem>>, vector<4x4xf32>
    %cst_5 = arith.constant dense<0.000000e+00> : vector<4x1xf32>
    %7 = tpu.matmul %6, %5, %cst_5 {dimension_numbers = #tpu.dot_dimension_numbers<[1], [0], [0], [1], [0, 0, 1, 1], [], []>} : vector<4x4xf32>, vector<4x1xf32>, vector<4x1xf32> -> vector<4x1xf32>
    %c0_6 = arith.constant 0 : index
    %c0_7 = arith.constant 0 : index
    %8 = vector.load %arg3[%c0_6, %c0_7] : memref<4x1xf32, #tpu.memory_space<vmem>>, vector<4x1xf32>
    %9 = arith.addf %7, %8 : vector<4x1xf32>
    %10 = arith.negf %9 : vector<4x1xf32>
    %11 = math.exp %10 : vector<4x1xf32>
    %cst_8 = arith.constant 1.000000e+00 : f32
    %12 = vector.broadcast %cst_8 : f32 to vector<4x1xf32>
    %13 = arith.addf %12, %11 : vector<4x1xf32>
    %14 = arith.divf %12, %13 : vector<4x1xf32>
    %15 = vector.broadcast %14 : vector<4x1xf32> to vector<4x256xf32>
    %16 = arith.mulf %1, %15 : vector<4x256xf32>
    %c0_9 = arith.constant 0 : index
    %c0_10 = arith.constant 0 : index
    %c0_11 = arith.constant 0 : index
    %17 = vector.load %arg4[%c0_9, %c0_10, %c0_11] : memref<1x4x256xf32, #tpu.memory_space<vmem>>, vector<1x4x256xf32>
    %18 = vector.shape_cast %17 : vector<1x4x256xf32> to vector<4x256xf32>
    %19 = vector.shape_cast %16 : vector<4x256xf32> to vector<1x4x256xf32>
    tpu.vector_store %arg4[%c0_9, %c0_10, %c0_11], %19 {strides = array<i32>} : memref<1x4x256xf32, #tpu.memory_space<vmem>>, vector<1x4x256xf32>,
    return
  }
  func.func @transform_0(%arg0: i32) -> (i32, i32, i32) {
    %c0_i32 = arith.constant 0 : i32
    %c0_i32_0 = arith.constant 0 : i32
    %c0_i32_1 = arith.constant 0 : i32
    return %arg0, %c0_i32, %c0_i32_0 : i32, i32, i32
  }
  func.func @transform_1(%arg0: i32) -> (i32, i32) {
    %c0_i32 = arith.constant 0 : i32
    %c0_i32_0 = arith.constant 0 : i32
    %c0_i32_1 = arith.constant 0 : i32
    return %c0_i32, %c0_i32_0 : i32, i32
  }
  func.func @transform_2(%arg0: i32) -> (i32, i32) {
    %c0_i32 = arith.constant 0 : i32
    %c0_i32_0 = arith.constant 0 : i32
    %c0_i32_1 = arith.constant 0 : i32
    return %c0_i32, %c0_i32_0 : i32, i32
  }
  func.func @transform_3(%arg0: i32) -> (i32, i32, i32) {
    %c0_i32 = arith.constant 0 : i32
    %c0_i32_0 = arith.constant 0 : i32
    %c0_i32_1 = arith.constant 0 : i32
    return %arg0, %c0_i32, %c0_i32_0 : i32, i32, i32
  }
}

</mosaic_0001>

<llo_original>
// kernel: tpu_custom_call.1
$region0: #{tpu_custom_call.1}
  #allocation0 [shape = 'u32[]', space=smem, size = 0x4, offset = 0x4, fixed_abs, tag = 'smem constant byte address 0x4 - core index']
  #allocation1 [shape = 'u32[72,128]{1,0:T(1,128)}', space=vmem, size = 0x9000, scoped, tag = 'internal scratch']
  %s0 = inlined_call_operand.hbm [shape: f32[2,4,256], index: 0, kind: input, shape index: {}]
  %s1 = inlined_call_operand.vmem [shape: f32[4,4], index: 1, kind: input, shape index: {}]
  %s2 = inlined_call_operand.vmem [shape: f32[4,1], index: 2, kind: input, shape index: {}]
  %s3 = inlined_call_operand.hbm [shape: f32[2,4,256], index: 3, kind: output, shape index: {}]
  %s4 = sld [smem:[#allocation0]]
  $region49: #{tpu_custom_call.1} parent=0
    _
  %s6 = ssub.s32 1, %s4
  %s7 = scalar_select 0, %s6, %s4
  $region1: #{tpu_custom_call.1} parent=0
    #allocation2 [shape = 'u8[8192]{0}', space=vmem, size = 0x2000, scoped, tag = 'input window, operand 0']
    #allocation3 [shape = 's32[2]{0}', space=sflag, size = 0x8, scoped, tag = 'scoped memory for tpu_custom_call.1']
    #allocation4 [shape = 's32[2]{0}', space=sflag, size = 0x8, scoped, tag = 'scoped memory for tpu_custom_call.1']
    #allocation5 [shape = 'u8[8192]{0}', space=vmem, size = 0x2000, scoped, tag = 'output window, operand 0']
    %8 = vsyncpa [#allocation3], 0
    %s9 = scalar_lea.sflag [#allocation3], 1
    %10 = vsyncpa %s9, 0
    %11 = vsyncpa [#allocation4], 0
    %s12 = scalar_lea.sflag [#allocation4], 1
    %13 = vsyncpa %s12, 0
    loop: start=0, step=1, limit=4
    $region2: #{tpu_custom_call.1} parent=1 // loop_pre_header
      _
    $region3: #{tpu_custom_call.1} parent=1 // loop_header
      %s15 = sphi 0, %s19
      %p16 = scmp.ge.s32.totalorder %s15, 4
      %s25 = sphi 0, %s27
      %s28 = sphi 0, %s25
      %s29 = sphi 0, %s28
      %s45 = sphi 0, %s29
      %s49 = sphi 0, %s49
      %s51 = sphi 0, %s49
      %s52 = sphi 0, %s51
      %s66 = sphi 0, %s52
      %s70 = sphi 0, %s70
      %s72 = sphi 0, %s70
      %s73 = sphi 0, %s72
      %s87 = sphi 0, %s73
      %s93 = sphi 0, %s95
      %s96 = sphi 0, %s93
      %s97 = sphi 0, %s96
      %s113 = sphi 0, %s97
    $region4: #{tpu_custom_call.1} parent=1 // loop_header_branch
      %18 = sbr.rel (%p16) target = $region8
    $region5: #{tpu_custom_call.1} parent=1 // loop_body
      %s20 = ssub.s32 %s15, 1
      %s21 = ssub.s32 %s15, 2
      %s22 = sadd.s32 %s15, 1
      %s23 = ssub.s32 %s15, %s22
      %p24 = scmp.eq.s32.totalorder %s23, 0
      %s26 = sadd.s32 %s25, 1
      %s27 = scalar_select %p24, %s25, %s26
      %p30 = pneg %p24
      %p31 = scmp.eq.s32.totalorder %s15, 1
      %p32 = por %p30, %p31
      %p33 = scmp.ne.s32.totalorder %s25, %s28
      %p34 = scmp.eq.s32.totalorder %s15, 0
      %p35 = por %p33, %p34
      %p36 = scmp.ne.s32.totalorder %s25, %s28
      %p37 = scmp.eq.s32.totalorder %s20, 1
      %p38 = por %p36, %p37
      %p39 = scmp.ne.s32.totalorder %s28, %s29
      %p40 = scmp.eq.s32.totalorder %s20, 0
      %p41 = por %p39, %p40
      %p42 = scmp.ne.s32.totalorder %s28, %s29
      %p43 = scmp.eq.s32.totalorder %s21, 1
      %p44 = por %p42, %p43
      %p46 = scmp.ne.s32.totalorder %s29, %s45
      %p47 = scmp.eq.s32.totalorder %s21, 0
      %p48 = por %p46, %p47
      %s50 = sadd.s32 %s49, 1
      %p53 = scmp.eq.s32.totalorder %s15, 1
      %p54 = scmp.ne.s32.totalorder %s49, %s51
      %p55 = scmp.eq.s32.totalorder %s15, 0
      %p56 = por %p54, %p55
      %p57 = scmp.ne.s32.totalorder %s49, %s51
      %p58 = scmp.eq.s32.totalorder %s20, 1
      %p59 = por %p57, %p58
      %p60 = scmp.ne.s32.totalorder %s51, %s52
      %p61 = scmp.eq.s32.totalorder %s20, 0
      %p62 = por %p60, %p61
      %p63 = scmp.ne.s32.totalorder %s51, %s52
      %p64 = scmp.eq.s32.totalorder %s21, 1
      %p65 = por %p63, %p64
      %p67 = scmp.ne.s32.totalorder %s52, %s66
      %p68 = scmp.eq.s32.totalorder %s21, 0
      %p69 = por %p67, %p68
      %s71 = sadd.s32 %s70, 1
      %p74 = scmp.eq.s32.totalorder %s15, 1
      %p75 = scmp.ne.s32.totalorder %s70, %s72
      %p76 = scmp.eq.s32.totalorder %s15, 0
      %p77 = por %p75, %p76
      %p78 = scmp.ne.s32.totalorder %s70, %s72
      %p79 = scmp.eq.s32.totalorder %s20, 1
      %p80 = por %p78, %p79
      %p81 = scmp.ne.s32.totalorder %s72, %s73
      %p82 = scmp.eq.s32.totalorder %s20, 0
      %p83 = por %p81, %p82
      %p84 = scmp.ne.s32.totalorder %s72, %s73
      %p85 = scmp.eq.s32.totalorder %s21, 1
      %p86 = por %p84, %p85
      %p88 = scmp.ne.s32.totalorder %s73, %s87
      %p89 = scmp.eq.s32.totalorder %s21, 0
      %p90 = por %p88, %p89
      %s91 = ssub.s32 %s15, %s22
      %p92 = scmp.eq.s32.totalorder %s91, 0
      %s94 = sadd.s32 %s93, 1
      %s95 = scalar_select %p92, %s93, %s94
      %p98 = pneg %p92
      %p99 = scmp.eq.s32.totalorder %s15, 1
      %p100 = por %p98, %p99
      %p101 = scmp.ne.s32.totalorder %s93, %s96
      %p102 = scmp.eq.s32.totalorder %s15, 0
      %p103 = por %p101, %p102
      %p104 = scmp.ne.s32.totalorder %s93, %s96
      %p105 = scmp.eq.s32.totalorder %s20, 1
      %p106 = por %p104, %p105
      %p107 = scmp.ne.s32.totalorder %s96, %s97
      %p108 = scmp.eq.s32.totalorder %s20, 0
      %p109 = por %p107, %p108
      %p110 = scmp.ne.s32.totalorder %s96, %s97
      %p111 = scmp.eq.s32.totalorder %s21, 1
      %p112 = por %p110, %p111
      %p114 = scmp.ne.s32.totalorder %s97, %s113
      %p115 = scmp.eq.s32.totalorder %s21, 0
      %p116 = por %p114, %p115
      %p117 = scmp.le.s32.totalorder 1, %s15
      %p118 = scmp.lt.s32.totalorder %s15, 3
      %p119 = pnand %p117, %p118
      %p120 = pneg %p119
      // Predicated region
      $region9: #{tpu_custom_call.1} parent=5 // pred_check
        _
      $region10: #{tpu_custom_call.1} parent=5 // pred_check_branch
        %122 = sbr.rel (%p119) target = $region12
      $region11: #{tpu_custom_call.1} parent=5 // pred_region
        %s123 = ssub.s32 %s15, 1
        // Predicated region
        $region13: #{tpu_custom_call.1} parent=11 // pred_check
          %p124 = pneg %p62
        $region14: #{tpu_custom_call.1} parent=11 // pred_check_branch
          %126 = sbr.rel (%p124) target = $region16
        $region15: #{tpu_custom_call.1} parent=11 // pred_region
          _
        $region16: #{tpu_custom_call.1} parent=11 // pred_fallthru
          _
        // Predicated region
        $region17: #{tpu_custom_call.1} parent=11 // pred_check
          %p127 = pneg %p83
        $region18: #{tpu_custom_call.1} parent=11 // pred_check_branch
          %129 = sbr.rel (%p127) target = $region20
        $region19: #{tpu_custom_call.1} parent=11 // pred_region
          _
        $region20: #{tpu_custom_call.1} parent=11 // pred_fallthru
          _
      $region12: #{tpu_custom_call.1} parent=5 // pred_fallthru
        _
      %p130 = scmp.lt.s32.totalorder %s15, 2
      // Predicated region
      $region21: #{tpu_custom_call.1} parent=5 // pred_check
        %p131 = pneg %p130
      $region22: #{tpu_custom_call.1} parent=5 // pred_check_branch
        %133 = sbr.rel (%p131) target = $region24
      $region23: #{tpu_custom_call.1} parent=5 // pred_region
        // Predicated region
        $region25: #{tpu_custom_call.1} parent=23 // pred_check
          %p134 = pneg %p35
        $region26: #{tpu_custom_call.1} parent=23 // pred_check_branch
          %136 = sbr.rel (%p134) target = $region28
        $region27: #{tpu_custom_call.1} parent=23 // pred_region
          %s137 = sand.u32 %s25, 1
          %s138 = scalar_lea.sflag [#allocation3], %s137
          %s139 = sand.u32 %s25, 1
          %s140 = smul.addr %s139, 8
          %s141 = scalar_lea.vmem [#allocation2], %s140
          %143 = vsyncadd %s138, 0
          %s144 = smul.addr %s15, 2
          %s145 = smul.addr %s144, 4
          %s146 = scalar_lea.hbm %s0, %s145
          %s148 = sshll.u32 %s146, 4
          %s149 = int_to_ptr.hbm [resolvable:$true] %s148
          %s150 = sshll.u32 %s141, 4
          %s151 = int_to_ptr.vmem [resolvable:$true] %s150
          %153 = dma.hbm_to_vmem [thread:$0]  %s149, 128, %s151, %s138
        $region28: #{tpu_custom_call.1} parent=23 // pred_fallthru
          _
      $region24: #{tpu_custom_call.1} parent=5 // pred_fallthru
        _
      %p154 = scmp.le.s32.totalorder 1, %s15
      %p155 = scmp.lt.s32.totalorder %s15, 3
      %p156 = pnand %p154, %p155
      %p157 = pneg %p156
      // Predicated region
      $region29: #{tpu_custom_call.1} parent=5 // pred_check
        _
      $region30: #{tpu_custom_call.1} parent=5 // pred_check_branch
        %159 = sbr.rel (%p156) target = $region32
      $region31: #{tpu_custom_call.1} parent=5 // pred_region
        %s160 = ssub.s32 %s15, 1
        %s161 = sand.u32 %s28, 1
        %s162 = scalar_lea.sflag [#allocation3], %s161
        %s163 = sand.u32 %s28, 1
        %s164 = smul.addr %s163, 8
        %s165 = scalar_lea.vmem [#allocation2], %s164
        // Predicated region
        $region33: #{tpu_custom_call.1} parent=31 // pred_check
          %p166 = pneg %p41
        $region34: #{tpu_custom_call.1} parent=31 // pred_check_branch
          %168 = sbr.rel (%p166) target = $region36
        $region35: #{tpu_custom_call.1} parent=31 // pred_region
          %170 = dma.done %s162, 128
        $region36: #{tpu_custom_call.1} parent=31 // pred_fallthru
          _
        %s171 = sand.u32 %s28, 1
        %s172 = scalar_lea.sflag [#allocation3], %s171
        %s173 = sand.u32 %s28, 1
        %s174 = smul.addr %s173, 8
        %s175 = scalar_lea.vmem [#allocation2], %s174
        %p176 = pneg %p41
        %p177 = pneg %p38
        %p178 = pneg %p62
        %p179 = pneg %p59
        %p180 = pneg %p83
        %p181 = pneg %p80
        %p182 = pneg %p109
        %p183 = pneg %p106
        %s184 = sand.u32 %s96, 1
        %s185 = scalar_lea.sflag [#allocation4], %s184
        %s186 = sand.u32 %s96, 1
        %s187 = smul.addr %s186, 8
        %s188 = scalar_lea.vmem [#allocation5], %s187
        %v189 = vld [vmem:[%s165] sm:$0xff]
        %191 = vst [vmem:[#allocation1] ss:$2 sm:$0xff] %v189
        %v192 = vld.sshfl [vmem:[#allocation1] sm:$0xff pattern:$0x75316420]
        %v193 = vld.sshfl [vmem:[#allocation1 + $0x8] sm:$0xff pattern:$0x75316420]
        %vm196 = vcmask 1043456
        %v197 = vsel %vm196, %v192, 0.0
        %v198 = vsel %vm196, %v193, 0.0
        %v199 = vadd.f32 %v197, %v198
        %200 = vadd.xlane.f32.xlu0 %v199
        %v201 = vpop.xlane.xlu0 %200
        %v202 = vmul.f32 %v201, 0.00390625
        %v203 = vld [vmem:[%s1] sm:$0xf]
        %v204 = vld [vmem:[%s2] sm:$0xf]
        %vm205 = vcmask 31744
        %v207 = vsel %vm205, %v203, 0
        %v210 = vsel %vm196, %v202, 0
        %212 = vmatpush.msra.mxu0 0.0
        %213 = vmatpush.msra.mxu0 0.0
        %214 = vmatpush.msra.mxu0 0.0
        %215 = vmatpush.msra.mxu0 0.0
        %216 = vmatpush.msra.mxu0 0.0
        %217 = vmatpush.msra.mxu0 0.0
        %218 = vmatpush.msra.mxu0 0.0
        %219 = vmatpush.msra.mxu0 0.0
        %220 = vmatpush.msra.mxu0 0.0
        %221 = vmatpush.msra.mxu0 0.0
        %222 = vmatpush.msra.mxu0 0.0
        %223 = vmatpush.msra.mxu0 0.0
        %224 = vmatpush.msra.mxu0 0.0
        %225 = vmatpush.msra.mxu0 0.0
        %226 = vmatpush.msra.mxu0 0.0
        %227 = vmatpush.msra.mxu0 %v210
        %228 = vmatmul.f32.gmra.mxu0 %v207
        %v229 = vpop.f32.mrf.mxu0
        %v230 = vadd.f32 %v204, %v229
        %231 = vdwg.mxu0
        %v232 = vxor.u32 %v230, 2147483648
        %v233 = vmul.f32 %v232, 1.442695
        %v234 = vpow.pop %v233
        %v235 = vadd.f32 %v234, 1.0
        %v236 = vrcp.pop %v235
        %v237 = vmul.f32 %v235, %v236
        %v238 = vsub.f32 1.0, %v237
        %v239 = vmul.f32 %v236, %v238
        %v240 = vadd.f32 %v236, %v239
        %vm241 = vweird.f32 %v235
        %vm242 = vweird.f32 %v236
        %vm243 = vmor %vm241, %vm242
        %v244 = vsel %vm243, %v236, %v240
        %v245 = vand.u32 2147483647, %v235
        %vm246 = vcmp.eq.f32.partialorder %v245, 8.507059e+37
        %v247 = vand.u32 %v235, 2147483648
        %v248 = vor.u32 1.1754944e-38, %v247
        %v249 = vsel %vm246, %v248, %v244
        %v250 = vmul.f32 1.0, %v249
        %252 = vset.pattern.permute.xlu0 0
        %253 = vperm.xlu0 %252, %v250
        %v254 = vpop.permute.xlu0 %253
        %v256 = vunpack.c.l.s4 839922192
        %v257 = vunpack.c.0.s8 %v256
        %v258 = vperm.slane %v254, %v257
        %v260 = vmul.f32 %v189, %v258
        %261 = vst [vmem:[%s188] sm:$0xff] %v260
        %s262 = sand.u32 %s96, 1
        %s263 = scalar_lea.sflag [#allocation4], %s262
        %s264 = sand.u32 %s96, 1
        %s265 = smul.addr %s264, 8
        %s266 = scalar_lea.vmem [#allocation5], %s265
        // Predicated region
        $region37: #{tpu_custom_call.1} parent=31 // pred_check
          %p267 = pneg %p106
        $region38: #{tpu_custom_call.1} parent=31 // pred_check_branch
          %269 = sbr.rel (%p267) target = $region40
        $region39: #{tpu_custom_call.1} parent=31 // pred_region
          %271 = vsyncadd %s263, 0
          %s272 = smul.addr %s20, 2
          %s273 = smul.addr %s272, 4
          %s274 = scalar_lea.hbm %s3, %s273
          %s276 = sshll.u32 %s266, 4
          %s277 = int_to_ptr.vmem [resolvable:$true] %s276
          %s278 = sshll.u32 %s274, 4
          %s279 = int_to_ptr.hbm [resolvable:$true] %s278
          %281 = dma.vmem_to_hbm [thread:$0]  %s277, 128, %s279, %s263
        $region40: #{tpu_custom_call.1} parent=31 // pred_fallthru
          _
      $region32: #{tpu_custom_call.1} parent=5 // pred_fallthru
        _
      %p282 = scmp.le.s32.totalorder 2, %s15
      // Predicated region
      $region41: #{tpu_custom_call.1} parent=5 // pred_check
        %p283 = pneg %p282
      $region42: #{tpu_custom_call.1} parent=5 // pred_check_branch
        %285 = sbr.rel (%p283) target = $region44
      $region43: #{tpu_custom_call.1} parent=5 // pred_region
        %s286 = ssub.s32 %s15, 2
        // Predicated region
        $region45: #{tpu_custom_call.1} parent=43 // pred_check
          %p287 = pneg %p112
        $region46: #{tpu_custom_call.1} parent=43 // pred_check_branch
          %289 = sbr.rel (%p287) target = $region48
        $region47: #{tpu_custom_call.1} parent=43 // pred_region
          %s290 = sand.u32 %s97, 1
          %s291 = scalar_lea.sflag [#allocation4], %s290
          %s292 = sand.u32 %s97, 1
          %s293 = smul.addr %s292, 8
          %s294 = scalar_lea.vmem [#allocation5], %s293
          %296 = dma.done %s291, 128
        $region48: #{tpu_custom_call.1} parent=43 // pred_fallthru
          _
      $region44: #{tpu_custom_call.1} parent=5 // pred_fallthru
        _
    $region6: #{tpu_custom_call.1} parent=1 // loop_footer
      %s19 = sadd.s32 1, %s15
    $region7: #{tpu_custom_call.1} parent=1 // loop_footer_branch
      %14 = sbr.rel target = $region3
    $region8: #{tpu_custom_call.1} parent=1 // loop_exit
      _
    %297 = vsyncpa [#allocation3], 1
    %s298 = scalar_lea.sflag [#allocation3], 1
    %299 = vsyncpa %s298, 1
    %300 = vsyncpa [#allocation4], 1
    %s301 = scalar_lea.sflag [#allocation4], 1
    %302 = vsyncpa %s301, 1

</llo_original>
